<compile_context>
chip_gen: v6e
topology: v6e:2x2x1
jax: 0.10.0
libtpu: 0.0.40
codegen_flags: <defaults>
</compile_context>

<pallas_src>
import functools

import jax
import jax.numpy as jnp
from jax.experimental import pallas as pl
from jax.experimental.pallas import tpu as pltpu


def _hsigmoid_kernel(x_ref, o_ref):
    # Compute in f32 regardless of storage dtype, cast back on store.
    x = x_ref[...].astype(jnp.float32)
    y = jnp.clip(x + 3.0, 0.0, 6.0) * (1.0 / 6.0)
    o_ref[...] = y.astype(o_ref.dtype)


# --------------------------------------------------------------------------
# Tiling configuration
# --------------------------------------------------------------------------
_MIN_SPLIT_BYTES = 512 * 1024   # below this, per-step overhead beats a 2-core gain


def _sublane_multiple(itemsize: int) -> int:
    # Sub-32-bit dtypes pack along sublanes; keep block rows aligned accordingly.
    return {4: 8, 2: 16, 1: 32}.get(itemsize, 8)


def _round_up(n: int, m: int) -> int:
    return ((n + m - 1) // m) * m


@functools.lru_cache(maxsize=None)
def _hw_config():
    """(block_bytes, vmem_limit_bytes), generation-aware with a safe fallback."""
    block_bytes = 8 * 1024 * 1024           # 8 MiB blocks: 2 bufs x (in+out) = 32 MiB
    vmem_limit = 48 * 1024 * 1024           # safe under v7x's 64 MiB physical VMEM
    try:
        cap = getattr(pltpu.get_tpu_info(), "vmem_capacity_bytes", None)
        if cap is not None and cap >= 96 * 1024 * 1024:
            vmem_limit = 64 * 1024 * 1024   # v5e/v6e: 128 MiB physical -> more headroom
    except Exception:
        pass
    return block_bytes, vmem_limit


def _choose_lane(total: int):
    # Widest lane-dense last dim that evenly divides the element count.
    for lane in (4096, 2048, 1024, 512, 256, 128):
        if total % lane == 0:
            return lane
    return None


def _run_2d(x2d: jax.Array, donate: bool = False) -> jax.Array:
    """Run the elementwise kernel over an arbitrary 2-D view.

    Blocks are either full-dim (always legal) or (sublane, 128)-aligned; a
    trailing partial block, if any, is edge-masked by Pallas - no padding.
    """
    rows, cols = x2d.shape
    itemsize = x2d.dtype.itemsize
    sub = _sublane_multiple(itemsize)
    block_bytes, vmem_limit = _hw_config()
    total_bytes = rows * cols * itemsize
    # Per-row / per-column VMEM footprint including (sublane, lane) tile padding.
    row_bytes_padded = _round_up(cols, 128) * itemsize
    col_bytes_padded = _round_up(rows, sub) * itemsize

    block_rows, block_cols = rows, cols              # default: one full-array block
    if rows >= 2 * sub and total_bytes > _MIN_SPLIT_BYTES:
        # Row-tile with full (lane-dense) columns.  Cap the block at half the
        # rows so the "parallel" grid always has >= 2 blocks -> both v7x
        # TensorCores get work even when the whole array fits in one block.
        target = max(sub, (block_bytes // row_bytes_padded) // sub * sub)
        half = _round_up(pl.cdiv(rows, 2), sub)
        block_rows = min(target, half)
    elif total_bytes > block_bytes:
        # Short-and-wide array (rare): tile columns in 128-lane multiples.
        block_cols = max(128, (block_bytes // col_bytes_padded) // 128 * 128)

    grid = (pl.cdiv(rows, block_rows), pl.cdiv(cols, block_cols))

    cost = pl.CostEstimate(
        flops=4 * rows * cols,           # add + 2 clamps + mul per element
        transcendentals=0,
        bytes_accessed=2 * total_bytes,  # one read + one write of the array
    )

    return pl.pallas_call(
        _hsigmoid_kernel,
        out_shape=jax.ShapeDtypeStruct((rows, cols), x2d.dtype),
        grid_spec=pltpu.PrefetchScalarGridSpec(
            num_scalar_prefetch=0,
            grid=grid,
            in_specs=[pl.BlockSpec((block_rows, block_cols), lambda i, j: (i, j))],
            out_specs=pl.BlockSpec((block_rows, block_cols), lambda i, j: (i, j)),
        ),
        compiler_params=pltpu.CompilerParams(
            dimension_semantics=("parallel", "parallel"),
            vmem_limit_bytes=vmem_limit,
        ),
        cost_estimate=cost,
        # Optional in-place update when the caller donates the activation
        # buffer: halves peak HBM footprint (bytes moved are unchanged).
        input_output_aliases={0: 0} if donate else {},
    )(x2d)


def quantizable_hsigmoid(x: jax.Array, *, donate: bool = False) -> jax.Array:
    """Hard-sigmoid (ReLU6(x + 3) / 6) elementwise via a Pallas TPU kernel."""
    orig_shape = x.shape
    total = x.size
    if total == 0:
        return x

    lane = _choose_lane(total)
    if lane is not None:
        # Fast path: metadata-only reshape to a lane-dense slab.
        out2d = _run_2d(x.reshape(total // lane, lane), donate=donate)
        return out2d.reshape(orig_shape)

    # Element count not a multiple of 128 (rare): run directly over a 2-D view
    # of the original shape.  Blocks are full-dim or edge-masked, so there is
    # no padding / slicing and no extra HBM passes (the last dim just isn't
    # lane-dense, which is fine for this rare path).
    if x.ndim >= 2:
        x2d = x.reshape(-1, orig_shape[-1])
    else:
        x2d = x.reshape(1, total)
    return _run_2d(x2d, donate=donate).reshape(orig_shape)


def _ref(x):
    return jnp.clip(x + 3.0, 0.0, 6.0) * (1.0 / 6.0)


if __name__ == "__main__":
    key = jax.random.PRNGKey(0)
    k1, k2, k3, k4 = jax.random.split(key, 4)

    # Small NCHW conv-activation input (lane-dense fast path, single block).
    x = jax.random.normal(k1, (2, 4, 16, 16), dtype=jnp.float32) * 4.0
    y = jax.block_until_ready(quantizable_hsigmoid(x))
    assert y.shape == x.shape and y.dtype == x.dtype
    assert jnp.allclose(y, _ref(x), atol=1e-6), "mismatch (small fast path)"

    # Moderate input: row-tiled, >= 2 parallel blocks (megacore on v7x).
    x2 = jax.random.normal(k2, (8, 32, 64, 128), dtype=jnp.float32) * 4.0
    y2 = jax.block_until_ready(quantizable_hsigmoid(x2))
    assert jnp.allclose(y2, _ref(x2), atol=1e-6), "mismatch (tiled path)"

    # Odd element count (not a multiple of 128): direct 2-D view, no pad/slice.
    x3 = jax.random.normal(k3, (3, 5, 7), dtype=jnp.float32) * 4.0
    y3 = jax.block_until_ready(quantizable_hsigmoid(x3))
    assert jnp.allclose(y3, _ref(x3), atol=1e-6), "mismatch (odd-shape path)"

    # Low-precision input: kernel computes in f32 internally, casts on store.
    x4 = jax.random.normal(k4, (2, 8, 8, 8), dtype=jnp.bfloat16) * 4.0
    y4 = jax.block_until_ready(quantizable_hsigmoid(x4))
    assert y4.dtype == jnp.bfloat16
    assert jnp.allclose(y4.astype(jnp.float32),
                        _ref(x4.astype(jnp.float32)), atol=2e-2), "mismatch (bf16)"

    print("KERNEL_OK")
</pallas_src>

<mosaic_0001>
module attributes {stable_mosaic.version = 11 : i64} {
  func.func @_hsigmoid_kernel(%arg0: i32, %arg1: i32, %arg2: memref<1x2048xf32, #tpu.memory_space<vmem>>, %arg3: memref<1x2048xf32, #tpu.memory_space<vmem>>) attributes {dimension_semantics = [#tpu.dimension_semantics<parallel>, #tpu.dimension_semantics<parallel>], iteration_bounds = array<i64: 1, 1>, scalar_prefetch = 0 : i64, scratch_operands = 0 : i64, tpu.core_type = #tpu.core_type<tc>, window_params = [{transform_indices = @transform_0, window_bounds = array<i64: 1, 2048>}, {transform_indices = @transform_1, window_bounds = array<i64: 1, 2048>}]} {
    %c0 = arith.constant 0 : index
    %c0_0 = arith.constant 0 : index
    %0 = vector.load %arg2[%c0, %c0_0] : memref<1x2048xf32, #tpu.memory_space<vmem>>, vector<1x2048xf32>
    %cst = arith.constant 3.000000e+00 : f32
    %1 = vector.broadcast %cst : f32 to vector<1x2048xf32>
    %2 = arith.addf %0, %1 : vector<1x2048xf32>
    %cst_1 = arith.constant 0.000000e+00 : f32
    %cst_2 = arith.constant 6.000000e+00 : f32
    %3 = vector.broadcast %cst_1 : f32 to vector<1x2048xf32>
    %4 = arith.maximumf %3, %2 : vector<1x2048xf32>
    %5 = vector.broadcast %cst_2 : f32 to vector<1x2048xf32>
    %6 = arith.minimumf %5, %4 : vector<1x2048xf32>
    %cst_3 = arith.constant 0.166666672 : f32
    %7 = vector.broadcast %cst_3 : f32 to vector<1x2048xf32>
    %8 = arith.mulf %6, %7 : vector<1x2048xf32>
    %c0_4 = arith.constant 0 : index
    %c0_5 = arith.constant 0 : index
    %9 = vector.load %arg3[%c0_4, %c0_5] : memref<1x2048xf32, #tpu.memory_space<vmem>>, vector<1x2048xf32>
    tpu.vector_store %arg3[%c0_4, %c0_5], %8 {strides = array<i32>} : memref<1x2048xf32, #tpu.memory_space<vmem>>, vector<1x2048xf32>,
    return
  }
  func.func @transform_0(%arg0: i32, %arg1: i32) -> (i32, i32) {
    %c0_i32 = arith.constant 0 : i32
    return %arg0, %arg1 : i32, i32
  }
  func.func @transform_1(%arg0: i32, %arg1: i32) -> (i32, i32) {
    %c0_i32 = arith.constant 0 : i32
    return %arg0, %arg1 : i32, i32
  }
}

</mosaic_0001>

<llo_original>
// kernel: tpu_custom_call.1
$region0: #{tpu_custom_call.1}
  #allocation0 [shape = 'u32[]', space=smem, size = 0x4, offset = 0x4, fixed_abs, tag = 'smem constant byte address 0x4 - core index']
  #allocation1 [shape = 'u32[144,128]{1,0:T(1,128)}', space=vmem, size = 0x12000, scoped, tag = 'internal scratch']
  %s0 = inlined_call_operand.hbm [shape: f32[1,2048], index: 0, kind: input, shape index: {}]
  %s1 = inlined_call_operand.hbm [shape: f32[1,2048], index: 1, kind: output, shape index: {}]
  %s2 = sld [smem:[#allocation0]]
  $region18: #{tpu_custom_call.1} parent=0
    _
  %s4 = ssub.s32 1, %s2
  %s5 = scalar_select 0, %s4, %s2
  $region1: #{tpu_custom_call.1} parent=0
    #allocation2 [shape = 'u8[8192]{0}', space=vmem, size = 0x2000, scoped, tag = 'input window, operand 0, single buffered']
    #allocation3 [shape = 's32[1]{0}', space=sflag, size = 0x4, scoped, tag = 'scoped memory for tpu_custom_call.1']
    #allocation4 [shape = 's32[1]{0}', space=sflag, size = 0x4, scoped, tag = 'scoped memory for tpu_custom_call.1']
    #allocation5 [shape = 'u8[8192]{0}', space=vmem, size = 0x2000, scoped, tag = 'output window, operand 0, single buffered']
    %6 = vsyncpa [#allocation3], 0
    %7 = vsyncpa [#allocation4], 0
    // Predicated region
    $region2: #{tpu_custom_call.1} parent=1 // pred_check
      _
    $region3: #{tpu_custom_call.1} parent=1 // pred_check_branch
      %9 = sbr.rel (0) target = $region5
    $region4: #{tpu_custom_call.1} parent=1 // pred_region
      %s11 = ssub.s32 256, 256
      %12 = vsyncadd [#allocation3], %s11
      %s14 = sshll.u32 [#allocation2], 4
      %s15 = int_to_ptr.vmem [resolvable:$true] %s14
      %17 = dma.hbm_to_vmem [thread:$0]  %s0, 256, %s15, [#allocation3]
    $region5: #{tpu_custom_call.1} parent=1 // pred_fallthru
      _
    // Predicated region
    $region6: #{tpu_custom_call.1} parent=1 // pred_check
      _
    $region7: #{tpu_custom_call.1} parent=1 // pred_check_branch
      %19 = sbr.rel (0) target = $region9
    $region8: #{tpu_custom_call.1} parent=1 // pred_region
      %20 = dma.done [#allocation3], 256
    $region9: #{tpu_custom_call.1} parent=1 // pred_fallthru
      _
    %v21 = vld [vmem:[#allocation2] sm:$0xff]
    %v22 = vld [vmem:[#allocation2 + $0x8] sm:$0xff]
    %v23 = vadd.f32 %v21, 3.0
    %v24 = vadd.f32 %v22, 3.0
    %v25 = vmax.f32 %v23, 0.0
    %v26 = vmax.f32 %v24, 0.0
    %v27 = vmin.f32 %v25, 6.0
    %v28 = vmin.f32 %v26, 6.0
    %v29 = vmul.f32 %v27, 0.16666667
    %v30 = vmul.f32 %v28, 0.16666667
    %31 = vst [vmem:[#allocation5] sm:$0xff] %v29
    %32 = vst [vmem:[#allocation5 + $0x8] sm:$0xff] %v30
    // Predicated region
    $region10: #{tpu_custom_call.1} parent=1 // pred_check
      _
    $region11: #{tpu_custom_call.1} parent=1 // pred_check_branch
      %34 = sbr.rel (0) target = $region13
    $region12: #{tpu_custom_call.1} parent=1 // pred_region
      %s36 = ssub.s32 256, 256
      %37 = vsyncadd [#allocation4], %s36
      %s39 = sshll.u32 [#allocation5], 4
      %s40 = int_to_ptr.vmem [resolvable:$true] %s39
      %42 = dma.vmem_to_hbm [thread:$0]  %s40, 256, %s1, [#allocation4]
    $region13: #{tpu_custom_call.1} parent=1 // pred_fallthru
      _
    // Predicated region
    $region14: #{tpu_custom_call.1} parent=1 // pred_check
      _
    $region15: #{tpu_custom_call.1} parent=1 // pred_check_branch
      %44 = sbr.rel (0) target = $region17
    $region16: #{tpu_custom_call.1} parent=1 // pred_region
      %45 = dma.done [#allocation4], 256
    $region17: #{tpu_custom_call.1} parent=1 // pred_fallthru
      _
    %46 = vsyncpa [#allocation3], 1
    %47 = vsyncpa [#allocation4], 1

</llo_original>
